<compile_context>
chip_gen: v6e
topology: v6e:2x2x1
jax: 0.10.0
libtpu: 0.0.40
codegen_flags: <defaults>
</compile_context>

<pallas_src>
import jax
import jax.numpy as jnp
from jax.experimental import pallas as pl
from jax.experimental.pallas import tpu as pltpu

_LANE = 128                      # lane-dense last dim -> unmasked full-width stores
_MAX_TILE_ROWS = 8192            # 8192*128*4B = 4 MiB per f32 tile
_VMEM_LIMIT_BYTES = 32 * 1024 * 1024  # in+out double-buffered = 16 MiB, + headroom


def _logreg_kernel(w_ref, b_ref, x_ref, o_ref):
    # w_ref, b_ref: (1,1) scalars in SMEM.  x_ref/o_ref: (tile_rows, 128)
    # lane-dense f32 tiles in VMEM.
    w = w_ref[0, 0]
    b = b_ref[0, 0]
    z = x_ref[...] * w + b            # Linear(1,1): x @ W^T + b == x*w + b (VPU FMA)
    o_ref[...] = jax.nn.sigmoid(z)    # EUP; fully hidden under the HBM DMA stream


def _choose_tile_rows(rows):
    """Pick a sublane-aligned row tile; aim for >=2 grid steps on medium/large N."""
    if rows <= 512:                   # tiny input: one block equal to the array
        return rows
    target = ((pl.cdiv(rows, 2) + 7) // 8) * 8   # ~half the rows, multiple of 8
    return min(_MAX_TILE_ROWS, target)


def _logistic_regression_impl(x, weight, bias):
    """x: [N, 1] f32, weight: [1, 1] f32, bias: [1] f32 -> [N, 1] f32."""
    n, f = x.shape
    assert f == 1 and weight.shape == (1, 1) and bias.shape == (1,)

    w2 = weight.reshape(1, 1).astype(jnp.float32)
    b2 = bias.reshape(1, 1).astype(jnp.float32)

    # Lane-dense slab: [N, 1] -> [rows, 128] with at most 127 padded elements.
    x_flat = x.reshape(-1).astype(jnp.float32)        # contiguous reshape: free
    rows = pl.cdiv(n, _LANE)
    pad = rows * _LANE - n
    if pad:                                           # only when N % 128 != 0
        x_flat = jnp.pad(x_flat, (0, pad))
    x2 = x_flat.reshape(rows, _LANE)

    tile_rows = _choose_tile_rows(rows)
    grid = (pl.cdiv(rows, tile_rows),)                # last block may be partial

    out = pl.pallas_call(
        _logreg_kernel,
        out_shape=jax.ShapeDtypeStruct((rows, _LANE), jnp.float32),
        grid=grid,
        in_specs=[
            pl.BlockSpec((1, 1), lambda i: (0, 0), memory_space=pltpu.SMEM),  # w
            pl.BlockSpec((1, 1), lambda i: (0, 0), memory_space=pltpu.SMEM),  # b
            pl.BlockSpec((tile_rows, _LANE), lambda i: (i, 0)),               # x tile
        ],
        out_specs=pl.BlockSpec((tile_rows, _LANE), lambda i: (i, 0)),
        compiler_params=pltpu.CompilerParams(
            dimension_semantics=("parallel",),      # v7x: row tiles split over 2 TCs
            vmem_limit_bytes=_VMEM_LIMIT_BYTES,     # 4 MiB tiles fit v5e/v6e/v7x
        ),
    )(w2, b2, x2)

    y = out.reshape(-1)
    if pad:                                           # slice only when we padded
        y = y[:n]
    return y.reshape(n, 1)


# jit so reshapes are free layout ops and per-call dispatch overhead vanishes.
logistic_regression = jax.jit(_logistic_regression_impl)


def reference(x, weight, bias):
    return jax.nn.sigmoid(x.astype(jnp.float32) @ weight.T + bias)


if __name__ == "__main__":
    key = jax.random.PRNGKey(0)
    kx, kw, kb, kx2, kx3 = jax.random.split(key, 5)

    # Deterministic "parameters" matching torch.nn.Linear(1, 1) init range U(-1, 1).
    weight = jax.random.uniform(kw, (1, 1), jnp.float32, -1.0, 1.0)
    bias = jax.random.uniform(kb, (1,), jnp.float32, -1.0, 1.0)

    # Small batch of scalar features, shape (8, 1) — same as the module's forward.
    x = jax.random.normal(kx, (8, 1), jnp.float32)
    y = jax.block_until_ready(logistic_regression(x, weight, bias))
    y_ref = reference(x, weight, bias)
    assert y.shape == (8, 1)
    assert jnp.allclose(y, y_ref, atol=1e-6), "mismatch vs reference (N=8)"

    # N not a multiple of 128 -> exercises the minimal-pad + slice-back path.
    x_big = jax.random.normal(kx2, (300, 1), jnp.float32)
    y_big = jax.block_until_ready(logistic_regression(x_big, weight, bias))
    y_big_ref = reference(x_big, weight, bias)
    assert y_big.shape == (300, 1)
    assert jnp.allclose(y_big, y_big_ref, atol=1e-6), "mismatch vs reference (N=300)"

    # N a multiple of 128 -> exercises the zero-pad / zero-copy fast path.
    x_mid = jax.random.normal(kx3, (1024, 1), jnp.float32)
    y_mid = jax.block_until_ready(logistic_regression(x_mid, weight, bias))
    y_mid_ref = reference(x_mid, weight, bias)
    assert y_mid.shape == (1024, 1)
    assert jnp.allclose(y_mid, y_mid_ref, atol=1e-6), "mismatch vs reference (N=1024)"

    print("KERNEL_OK")
</pallas_src>

<mosaic_0001>
module attributes {stable_mosaic.version = 11 : i64} {
  func.func @_logreg_kernel(%arg0: i32, %arg1: memref<1x1xf32, #tpu.memory_space<smem>>, %arg2: memref<1x1xf32, #tpu.memory_space<smem>>, %arg3: memref<1x128xf32, #tpu.memory_space<vmem>>, %arg4: memref<1x128xf32, #tpu.memory_space<vmem>>) attributes {dimension_semantics = [#tpu.dimension_semantics<parallel>], iteration_bounds = array<i64: 1>, scalar_prefetch = 0 : i64, scratch_operands = 0 : i64, tpu.core_type = #tpu.core_type<tc>, window_params = [{transform_indices = @transform_0, window_bounds = array<i64: 1, 1>}, {transform_indices = @transform_1, window_bounds = array<i64: 1, 1>}, {transform_indices = @transform_2, window_bounds = array<i64: 1, 128>}, {transform_indices = @transform_3, window_bounds = array<i64: 1, 128>}]} {
    %c0 = arith.constant 0 : index
    %c0_0 = arith.constant 0 : index
    %0 = memref.load %arg1[%c0, %c0_0] : memref<1x1xf32, #tpu.memory_space<smem>>
    %c0_1 = arith.constant 0 : index
    %c0_2 = arith.constant 0 : index
    %1 = memref.load %arg2[%c0_1, %c0_2] : memref<1x1xf32, #tpu.memory_space<smem>>
    %c0_3 = arith.constant 0 : index
    %c0_4 = arith.constant 0 : index
    %2 = vector.load %arg3[%c0_3, %c0_4] : memref<1x128xf32, #tpu.memory_space<vmem>>, vector<1x128xf32>
    %3 = vector.broadcast %0 : f32 to vector<1x128xf32>
    %4 = arith.mulf %2, %3 : vector<1x128xf32>
    %5 = vector.broadcast %1 : f32 to vector<1x128xf32>
    %6 = arith.addf %4, %5 : vector<1x128xf32>
    %7 = arith.negf %6 : vector<1x128xf32>
    %8 = math.exp %7 : vector<1x128xf32>
    %cst = arith.constant 1.000000e+00 : f32
    %9 = vector.broadcast %cst : f32 to vector<1x128xf32>
    %10 = arith.addf %9, %8 : vector<1x128xf32>
    %11 = arith.divf %9, %10 : vector<1x128xf32>
    %c0_5 = arith.constant 0 : index
    %c0_6 = arith.constant 0 : index
    %12 = vector.load %arg4[%c0_5, %c0_6] : memref<1x128xf32, #tpu.memory_space<vmem>>, vector<1x128xf32>
    tpu.vector_store %arg4[%c0_5, %c0_6], %11 {strides = array<i32>} : memref<1x128xf32, #tpu.memory_space<vmem>>, vector<1x128xf32>,
    return
  }
  func.func @transform_0(%arg0: i32) -> (i32, i32) {
    %c0_i32 = arith.constant 0 : i32
    %c0_i32_0 = arith.constant 0 : i32
    %c0_i32_1 = arith.constant 0 : i32
    return %c0_i32, %c0_i32_0 : i32, i32
  }
  func.func @transform_1(%arg0: i32) -> (i32, i32) {
    %c0_i32 = arith.constant 0 : i32
    %c0_i32_0 = arith.constant 0 : i32
    %c0_i32_1 = arith.constant 0 : i32
    return %c0_i32, %c0_i32_0 : i32, i32
  }
  func.func @transform_2(%arg0: i32) -> (i32, i32) {
    %c0_i32 = arith.constant 0 : i32
    %c0_i32_0 = arith.constant 0 : i32
    return %arg0, %c0_i32 : i32, i32
  }
  func.func @transform_3(%arg0: i32) -> (i32, i32) {
    %c0_i32 = arith.constant 0 : i32
    %c0_i32_0 = arith.constant 0 : i32
    return %arg0, %c0_i32 : i32, i32
  }
}

</mosaic_0001>

<llo_original>
// kernel: _logistic_regression_impl.1
$region0: #{_logistic_regression_impl.1}
  #allocation0 [shape = 'u32[]', space=smem, size = 0x4, offset = 0x4, fixed_abs, tag = 'smem constant byte address 0x4 - core index']
  #allocation1 [shape = 'u32[144,128]{1,0:T(1,128)}', space=vmem, size = 0x12000, scoped, tag = 'internal scratch']
  #allocation2 [shape = 'f32[1,1]{1,0:T(1,128)S(6)}', space=smem, size = 0x200, scoped, tag = 'scoped memory for _logistic_regression_impl.1']
  #allocation3 [shape = 'f32[1,1]{1,0:T(1,128)S(6)}', space=smem, size = 0x200, scoped, tag = 'scoped memory for _logistic_regression_impl.1']
  %s0 = inlined_call_operand.<no memory space> [shape: f32[1,1], index: 0, kind: input, shape index: {}]
  %s1 = inlined_call_operand.<no memory space> [shape: f32[1,1], index: 1, kind: input, shape index: {}]
  %s2 = inlined_call_operand.vmem [shape: f32[1,128], index: 2, kind: input, shape index: {}]
  %s3 = inlined_call_operand.vmem [shape: f32[1,128], index: 3, kind: output, shape index: {}]
  %s4 = sld [smem:[#allocation0]]
  $region22: #{_logistic_regression_impl.1} parent=0
    _
  %s6 = ssub.s32 1, %s4
  %s7 = scalar_select 0, %s6, %s4
  %8 = sst [smem:[#allocation2]] %s0
  %9 = sst [smem:[#allocation3]] %s1
  // Predicated region
  $region2: #{_logistic_regression_impl.1} parent=0 // pred_check
    _
  $region3: #{_logistic_regression_impl.1} parent=0 // pred_check_branch
    %11 = sbr.rel (0) target = $region5
  $region4: #{_logistic_regression_impl.1} parent=0 // pred_region
    _
  $region5: #{_logistic_regression_impl.1} parent=0 // pred_fallthru
    _
  // Predicated region
  $region6: #{_logistic_regression_impl.1} parent=0 // pred_check
    _
  $region7: #{_logistic_regression_impl.1} parent=0 // pred_check_branch
    %13 = sbr.rel (0) target = $region9
  $region8: #{_logistic_regression_impl.1} parent=0 // pred_region
    _
  $region9: #{_logistic_regression_impl.1} parent=0 // pred_fallthru
    _
  // Predicated region
  $region10: #{_logistic_regression_impl.1} parent=0 // pred_check
    _
  $region11: #{_logistic_regression_impl.1} parent=0 // pred_check_branch
    %15 = sbr.rel (0) target = $region13
  $region12: #{_logistic_regression_impl.1} parent=0 // pred_region
    _
  $region13: #{_logistic_regression_impl.1} parent=0 // pred_fallthru
    _
  %s16 = sld [smem:[#allocation2]]
  %s17 = sld [smem:[#allocation3]]
  %v18 = vld [vmem:[%s2] sm:$0x1]
  %v19 = vstv %s16
  %v20 = vmul.f32 %v18, %v19
  %v21 = vstv %s17
  %v22 = vadd.f32 %v20, %v21
  %v23 = vxor.u32 %v22, 2147483648
  %v24 = vmul.f32 %v23, 1.442695
  %v25 = vpow.pop %v24
  %v26 = vadd.f32 %v25, 1.0
  %v27 = vrcp.pop %v26
  %v28 = vmul.f32 1.0, %v27
  %29 = vst [vmem:[%s3] sm:$0x1] %v28
  // Predicated region
  $region14: #{_logistic_regression_impl.1} parent=0 // pred_check
    _
  $region15: #{_logistic_regression_impl.1} parent=0 // pred_check_branch
    %31 = sbr.rel (0) target = $region17
  $region16: #{_logistic_regression_impl.1} parent=0 // pred_region
    _
  $region17: #{_logistic_regression_impl.1} parent=0 // pred_fallthru
    _
  // Predicated region
  $region18: #{_logistic_regression_impl.1} parent=0 // pred_check
    _
  $region19: #{_logistic_regression_impl.1} parent=0 // pred_check_branch
    %33 = sbr.rel (0) target = $region21
  $region20: #{_logistic_regression_impl.1} parent=0 // pred_region
    _
  $region21: #{_logistic_regression_impl.1} parent=0 // pred_fallthru
    _

</llo_original>
